<compile_context>
chip_gen: v7x
topology: tpu7x:2x2x1
jax: 0.10.0
libtpu: 0.0.40
codegen_flags: <defaults>
</compile_context>

<pallas_src>
import math
import jax
import jax.numpy as jnp
from jax import lax
from jax.experimental import pallas as pl
from jax.experimental.pallas import tpu as pltpu


# Above the 16/32 MiB scoped defaults (v5e/v6e), below v7x's 64 MiB physical VMEM.
_VMEM_LIMIT_BYTES = 48 * 1024 * 1024


# ---------------------------------------------------------------------------
# Kernel A: fused QKV projection  qkv = x @ [wq*s | wk | wv] + [bq*s | bk | bv]
# ---------------------------------------------------------------------------
def _qkv_proj_kernel(x_ref, w_ref, b_ref, o_ref):
    acc = jnp.dot(x_ref[...], w_ref[...], preferred_element_type=jnp.float32)
    o_ref[...] = (acc + b_ref[...]).astype(o_ref.dtype)


def _qkv_proj(x2d, wqkv, bqkv):
    BT, C = x2d.shape
    C3 = wqkv.shape[1]

    # Row (M) tiling: big tiles amortize the ~0.35 us/step grid overhead, but keep
    # at least 2 steps on this "parallel" axis so v7x's second TensorCore has work.
    tm = min(BT, 512)
    if BT // tm < 2 and BT >= 16 and BT % 16 == 0:
        tm = BT // 2

    # Column (N) tiling over 3C so the weight block stays VMEM-friendly at large C
    # (critical on v7x's 64 MiB VMEM); full width for small models.
    tn = C3 if C3 <= 1536 else 1024

    gm = pl.cdiv(BT, tm)
    gn = pl.cdiv(C3, tn)

    # Weight/bias blocks are constant when there is a single N tile -> keep one
    # resident copy instead of double-buffering.
    const_kwargs = dict(pipeline_mode=pl.Buffered(1)) if gn == 1 else {}

    return pl.pallas_call(
        _qkv_proj_kernel,
        out_shape=jax.ShapeDtypeStruct((BT, C3), jnp.bfloat16),
        grid_spec=pltpu.PrefetchScalarGridSpec(
            num_scalar_prefetch=0,
            grid=(gm, gn),
            in_specs=[
                pl.BlockSpec((tm, C), lambda i, j: (i, 0)),                    # x rows
                pl.BlockSpec((C, tn), lambda i, j: (0, j), **const_kwargs),    # qkv weight
                pl.BlockSpec((1, tn), lambda i, j: (0, j), **const_kwargs),    # qkv bias
            ],
            out_specs=pl.BlockSpec((tm, tn), lambda i, j: (i, j)),
        ),
        compiler_params=pltpu.CompilerParams(
            dimension_semantics=("parallel", "parallel"),
            vmem_limit_bytes=_VMEM_LIMIT_BYTES),
    )(x2d, wqkv, bqkv)


# ---------------------------------------------------------------------------
# Kernel B: per-(batch, query-tile) attention fused with the output projection.
# Reads q/k/v straight out of the (B*T, 3C) fused-QKV matrix (no host transpose),
# processes all heads in-kernel, and recombines them through one (Tq,C)@(C,C) matmul.
# ---------------------------------------------------------------------------
def _make_attn_proj_kernel(n_head, head_dim, n_embd, seq_len, tq):
    H, D, C, T, TQ = n_head, head_dim, n_embd, seq_len, tq

    def kernel(qkv_ref, wp_ref, bp_ref, o_ref):
        kv = qkv_ref[...]                                  # (T, 3C) bf16, whole batch slab
        if TQ == T:
            qtile = kv                                     # single query tile
        else:
            t = pl.program_id(1)
            row0 = pl.multiple_of(t * TQ, TQ)
            qtile = qkv_ref[pl.ds(row0, TQ), :]            # (TQ, 3C)

        ys = []
        for h in range(H):                                 # static, fully unrolled
            q_h = qtile[:, h * D:(h + 1) * D]              # pre-scaled by 1/sqrt(D)
            k_h = kv[:, C + h * D:C + (h + 1) * D]
            v_h = kv[:, 2 * C + h * D:2 * C + (h + 1) * D]

            # Scores (TQ, T): bf16 operands, f32 accumulation on the MXU.
            s = lax.dot_general(q_h, k_h, (((1,), (1,)), ((), ())),
                                preferred_element_type=jnp.float32)
            s = s - jnp.max(s, axis=-1, keepdims=True)
            p = jnp.exp(s)
            denom = jnp.sum(p, axis=-1, keepdims=True)
            # attn_drop is identity in eval mode.

            y_h = jnp.dot(p.astype(v_h.dtype), v_h,
                          preferred_element_type=jnp.float32)          # (TQ, D)
            # Normalize AFTER the PV matmul (TQ*D multiplies instead of TQ*T).
            y_h = y_h * pl.reciprocal(denom, approx=True)
            ys.append(y_h.astype(wp_ref.dtype))

        y = jnp.concatenate(ys, axis=-1)                   # (TQ, C) bf16, head-major
        out = jnp.dot(y, wp_ref[...], preferred_element_type=jnp.float32)
        # resid_drop is identity in eval mode.
        o_ref[0] = (out + bp_ref[...]).astype(o_ref.dtype)

    return kernel


def self_attention_pallas(x, params, n_head):
    wq, bq, wk, bk, wv, bv, wp, bp = params
    B, T, C = x.shape
    assert C % n_head == 0, "n_embd must be divisible by n_head"
    D = C // n_head
    scale = 1.0 / math.sqrt(D)

    # Host-side weight prep (one-time layout plumbing): fuse q/k/v, fold the
    # attention scale into the query projection, cast matmul operands to bf16.
    wqkv = jnp.concatenate([wq * scale, wk, wv], axis=1).astype(jnp.bfloat16)  # (C, 3C)
    bqkv = jnp.concatenate([bq * scale, bk, bv], axis=1).astype(jnp.float32)   # (1, 3C)
    wp_b = wp.astype(jnp.bfloat16)                                             # (C, C)
    bp_f = bp.astype(jnp.float32)                                              # (1, C)

    # Kernel A: fused QKV projection, batch*seq folded into the matmul M dim.
    x2d = x.reshape(B * T, C).astype(jnp.bfloat16)
    qkv = _qkv_proj(x2d, wqkv, bqkv)                                           # (B*T, 3C) bf16

    # Query tiling: bounds the live (TQ, T) score tensor and supplies a second
    # parallel grid axis; collapses to one tile at small T.
    TQ = T if (T <= 256 or T % 256 != 0) else 256
    NT = T // TQ

    kernel = _make_attn_proj_kernel(n_head, D, C, T, TQ)

    qkv_spec = pl.BlockSpec((T, 3 * C), lambda b, t: (b, 0))   # per-batch slab, fetched once/b
    wp_spec = pl.BlockSpec((C, C), lambda b, t: (0, 0), pipeline_mode=pl.Buffered(1))
    bp_spec = pl.BlockSpec((1, C), lambda b, t: (0, 0), pipeline_mode=pl.Buffered(1))

    return pl.pallas_call(
        kernel,
        out_shape=jax.ShapeDtypeStruct((B, T, C), x.dtype),
        grid_spec=pltpu.PrefetchScalarGridSpec(
            num_scalar_prefetch=0,
            grid=(B, NT),
            in_specs=[qkv_spec, wp_spec, bp_spec],
            out_specs=pl.BlockSpec((1, TQ, C), lambda b, t: (b, t, 0)),
        ),
        compiler_params=pltpu.CompilerParams(
            dimension_semantics=("parallel", "parallel"),
            vmem_limit_bytes=_VMEM_LIMIT_BYTES),
    )(qkv, wp_b, bp_f)


def self_attention_ref(x, params, n_head):
    """Pure-JAX f32 reference mirroring the PyTorch forward (dropout = identity)."""
    wq, bq, wk, bk, wv, bv, wp, bp = params
    B, T, C = x.shape
    D = C // n_head

    def proj(w, b):
        return (x @ w + b[0]).reshape(B, T, n_head, D).transpose(0, 2, 1, 3)

    q = proj(wq, bq)
    k = proj(wk, bk)
    v = proj(wv, bv)
    att = (q @ jnp.swapaxes(k, -2, -1)) * (1.0 / math.sqrt(D))
    att = jax.nn.softmax(att, axis=-1)
    y = att @ v
    y = y.transpose(0, 2, 1, 3).reshape(B, T, C)
    return y @ wp + bp[0]


if __name__ == "__main__":
    # Small shapes consistent with the module: B=2, T=8 (seq), C=32 (n_embd), 4 heads.
    B, T, C, H = 2, 8, 32, 4

    key = jax.random.PRNGKey(0)
    keys = jax.random.split(key, 9)

    x = jax.random.normal(keys[0], (B, T, C), dtype=jnp.float32)

    def init_linear(kw, kb, fan_in):
        bound = 1.0 / math.sqrt(fan_in)
        w = jax.random.uniform(kw, (C, C), jnp.float32, -bound, bound)   # (in, out)
        b = jax.random.uniform(kb, (1, C), jnp.float32, -bound, bound)
        return w, b

    wq, bq = init_linear(keys[1], keys[2], C)
    wk, bk = init_linear(keys[3], keys[4], C)
    wv, bv = init_linear(keys[5], keys[6], C)
    wp, bp = init_linear(keys[7], keys[8], C)
    params = (wq, bq, wk, bk, wv, bv, wp, bp)

    out = self_attention_pallas(x, params, H)
    out = jax.block_until_ready(out)

    ref = self_attention_ref(x, params, H)
    assert out.shape == (B, T, C)
    # bf16 MXU operands + approx reciprocal loosen tolerance vs. pure-f32 reference.
    assert jnp.allclose(out, ref, atol=3e-2, rtol=3e-2), "mismatch vs reference"

    print("KERNEL_OK")
</pallas_src>

<mosaic_0001>
module attributes {stable_mosaic.version = 11 : i64} {
  func.func @_qkv_proj_kernel(%arg0: i32, %arg1: i32, %arg2: memref<8x32xbf16, #tpu.memory_space<vmem>>, %arg3: memref<32x96xbf16, #tpu.memory_space<vmem>>, %arg4: memref<1x96xf32, #tpu.memory_space<vmem>>, %arg5: memref<8x96xbf16, #tpu.memory_space<vmem>>) attributes {dimension_semantics = [#tpu.dimension_semantics<parallel>, #tpu.dimension_semantics<parallel>], iteration_bounds = array<i64: 2, 1>, scalar_prefetch = 0 : i64, scratch_operands = 0 : i64, tpu.core_type = #tpu.core_type<tc>, window_params = [{transform_indices = @transform_0, window_bounds = array<i64: 8, 32>}, {pipeline_mode = #tpu.pipeline_mode<synchronous>, transform_indices = @transform_1, window_bounds = array<i64: 32, 96>}, {pipeline_mode = #tpu.pipeline_mode<synchronous>, transform_indices = @transform_2, window_bounds = array<i64: 1, 96>}, {transform_indices = @transform_3, window_bounds = array<i64: 8, 96>}]} {
    %c0 = arith.constant 0 : index
    %c0_0 = arith.constant 0 : index
    %0 = vector.load %arg2[%c0, %c0_0] : memref<8x32xbf16, #tpu.memory_space<vmem>>, vector<8x32xbf16>
    %c0_1 = arith.constant 0 : index
    %c0_2 = arith.constant 0 : index
    %1 = vector.load %arg3[%c0_1, %c0_2] : memref<32x96xbf16, #tpu.memory_space<vmem>>, vector<32x96xbf16>
    %cst = arith.constant dense<0.000000e+00> : vector<8x96xf32>
    %2 = tpu.matmul %0, %1, %cst {dimension_numbers = #tpu.dot_dimension_numbers<[1], [0], [0], [1], [0, 0, 1, 1], [], []>} : vector<8x32xbf16>, vector<32x96xbf16>, vector<8x96xf32> -> vector<8x96xf32>
    %c0_3 = arith.constant 0 : index
    %c0_4 = arith.constant 0 : index
    %3 = vector.load %arg4[%c0_3, %c0_4] : memref<1x96xf32, #tpu.memory_space<vmem>>, vector<1x96xf32>
    %4 = vector.broadcast %3 : vector<1x96xf32> to vector<8x96xf32>
    %5 = arith.addf %2, %4 : vector<8x96xf32>
    %6 = arith.truncf %5 : vector<8x96xf32> to vector<8x96xbf16>
    %c0_5 = arith.constant 0 : index
    %c0_6 = arith.constant 0 : index
    %7 = vector.load %arg5[%c0_5, %c0_6] : memref<8x96xbf16, #tpu.memory_space<vmem>>, vector<8x96xbf16>
    tpu.vector_store %arg5[%c0_5, %c0_6], %6 {strides = array<i32>} : memref<8x96xbf16, #tpu.memory_space<vmem>>, vector<8x96xbf16>,
    return
  }
  func.func @transform_0(%arg0: i32, %arg1: i32) -> (i32, i32) {
    %c0_i32 = arith.constant 0 : i32
    %c0_i32_0 = arith.constant 0 : i32
    return %arg0, %c0_i32 : i32, i32
  }
  func.func @transform_1(%arg0: i32, %arg1: i32) -> (i32, i32) {
    %c0_i32 = arith.constant 0 : i32
    %c0_i32_0 = arith.constant 0 : i32
    return %c0_i32, %arg1 : i32, i32
  }
  func.func @transform_2(%arg0: i32, %arg1: i32) -> (i32, i32) {
    %c0_i32 = arith.constant 0 : i32
    %c0_i32_0 = arith.constant 0 : i32
    return %c0_i32, %arg1 : i32, i32
  }
  func.func @transform_3(%arg0: i32, %arg1: i32) -> (i32, i32) {
    %c0_i32 = arith.constant 0 : i32
    return %arg0, %arg1 : i32, i32
  }
}

</mosaic_0001>

<llo_original>
// kernel: tpu_custom_call.1
$region0: #{tpu_custom_call.1}
  #allocation0 [shape = 'u32[]', space=smem, size = 0x4, offset = 0x4, fixed_abs, tag = 'smem constant byte address 0x4 - core index']
  #allocation1 [shape = 'u32[144,128]{1,0:T(1,128)}', space=vmem, size = 0x12000, scoped, tag = 'internal scratch']
  %s0 = inlined_call_operand.hbm [shape: bf16[16,32], index: 0, kind: input, shape index: {}]
  %s1 = inlined_call_operand.hbm [shape: bf16[32,96], index: 1, kind: input, shape index: {}]
  %s2 = inlined_call_operand.vmem [shape: f32[1,96], index: 2, kind: input, shape index: {}]
  %s3 = inlined_call_operand.hbm [shape: bf16[16,96], index: 3, kind: output, shape index: {}]
  %s4 = sld [smem:[#allocation0]]
  $region53: #{tpu_custom_call.1} parent=0
    _
  %s6 = ssub.s32 1, %s4
  %s7 = scalar_select 0, %s6, %s4
  $region1: #{tpu_custom_call.1} parent=0
    #allocation2 [shape = 'u8[4096]{0}', space=vmem, size = 0x1000, scoped, tag = 'input window, operand 0']
    #allocation3 [shape = 's32[2]{0}', space=sflag, size = 0x8, scoped, tag = 'scoped memory for tpu_custom_call.1']
    #allocation4 [shape = 's32[2]{0}', space=sflag, size = 0x8, scoped, tag = 'scoped memory for tpu_custom_call.1']
    #allocation5 [shape = 'u8[8192]{0}', space=vmem, size = 0x2000, scoped, tag = 'input window, operand 1, single buffered']
    #allocation6 [shape = 's32[1]{0}', space=sflag, size = 0x4, scoped, tag = 'scoped memory for tpu_custom_call.1']
    #allocation7 [shape = 'u8[4096]{0}', space=vmem, size = 0x1000, scoped, tag = 'output window, operand 0']
    %8 = vsyncpa [#allocation3], 0
    %s9 = scalar_lea.sflag [#allocation3], 1
    %10 = vsyncpa %s9, 0
    %11 = vsyncpa [#allocation6], 0
    %12 = vsyncpa [#allocation4], 0
    %s13 = scalar_lea.sflag [#allocation4], 1
    %14 = vsyncpa %s13, 0
    loop: start=0, step=1, limit=4
    $region2: #{tpu_custom_call.1} parent=1 // loop_pre_header
      _
    $region3: #{tpu_custom_call.1} parent=1 // loop_header
      %s16 = sphi 0, %s20
      %p17 = scmp.ge.s32.totalorder %s16, 4
      %s23 = sphi 0, %s35
      %s24 = sphi 0, %s31
      %s25 = sphi 0, %s23
      %s26 = sphi 0, %s24
      %s27 = sphi 0, %s25
      %s28 = sphi 0, %s26
      %s38 = sphi 0, %s40
      %s41 = sphi 0, %s38
      %s42 = sphi 0, %s41
      %s58 = sphi 0, %s42
      %s64 = sphi 0, %s66
      %s67 = sphi 0, %s64
      %s68 = sphi 0, %s67
      %s84 = sphi 0, %s68
      %s90 = sphi 0, %s92
      %s93 = sphi 0, %s90
      %s94 = sphi 0, %s93
      %s110 = sphi 0, %s94
      %s118 = sphi 0, %s120
      %s121 = sphi 0, %s118
      %s122 = sphi 0, %s121
      %s138 = sphi 0, %s122
    $region4: #{tpu_custom_call.1} parent=1 // loop_header_branch
      %19 = sbr.rel (%p17) target = $region8
    $region5: #{tpu_custom_call.1} parent=1 // loop_body
      %s21 = ssub.s32 %s16, 1
      %s22 = ssub.s32 %s16, 2
      %s29 = sadd.s32 1, %s24
      %p30 = scmp.ge.s32.totalorder %s29, 1
      %s31 = scalar_select %p30, 0, %s29
      %s32 = sadd.s32 1, %s23
      %s33 = scalar_select %p30, %s32, %s23
      %p34 = scmp.ge.s32.totalorder %s33, 2
      %s35 = scalar_select %p34, 0, %s33
      %s36 = ssub.s32 %s23, %s35
      %p37 = scmp.eq.s32.totalorder %s36, 0
      %s39 = sadd.s32 %s38, 1
      %s40 = scalar_select %p37, %s38, %s39
      %p43 = pneg %p37
      %p44 = scmp.eq.s32.totalorder %s16, 1
      %p45 = por %p43, %p44
      %p46 = scmp.ne.s32.totalorder %s38, %s41
      %p47 = scmp.eq.s32.totalorder %s16, 0
      %p48 = por %p46, %p47
      %p49 = scmp.ne.s32.totalorder %s38, %s41
      %p50 = scmp.eq.s32.totalorder %s21, 1
      %p51 = por %p49, %p50
      %p52 = scmp.ne.s32.totalorder %s41, %s42
      %p53 = scmp.eq.s32.totalorder %s21, 0
      %p54 = por %p52, %p53
      %p55 = scmp.ne.s32.totalorder %s41, %s42
      %p56 = scmp.eq.s32.totalorder %s22, 1
      %p57 = por %p55, %p56
      %p59 = scmp.ne.s32.totalorder %s42, %s58
      %p60 = scmp.eq.s32.totalorder %s22, 0
      %p61 = por %p59, %p60
      %s62 = ssub.s32 %s24, %s31
      %p63 = scmp.eq.s32.totalorder %s62, 0
      %s65 = sadd.s32 %s64, 1
      %s66 = scalar_select %p63, %s64, %s65
      %p69 = pneg %p63
      %p70 = scmp.eq.s32.totalorder %s16, 1
      %p71 = por %p69, %p70
      %p72 = scmp.ne.s32.totalorder %s64, %s67
      %p73 = scmp.eq.s32.totalorder %s16, 0
      %p74 = por %p72, %p73
      %p75 = scmp.ne.s32.totalorder %s64, %s67
      %p76 = scmp.eq.s32.totalorder %s21, 1
      %p77 = por %p75, %p76
      %p78 = scmp.ne.s32.totalorder %s67, %s68
      %p79 = scmp.eq.s32.totalorder %s21, 0
      %p80 = por %p78, %p79
      %p81 = scmp.ne.s32.totalorder %s67, %s68
      %p82 = scmp.eq.s32.totalorder %s22, 1
      %p83 = por %p81, %p82
      %p85 = scmp.ne.s32.totalorder %s68, %s84
      %p86 = scmp.eq.s32.totalorder %s22, 0
      %p87 = por %p85, %p86
      %s88 = ssub.s32 %s24, %s31
      %p89 = scmp.eq.s32.totalorder %s88, 0
      %s91 = sadd.s32 %s90, 1
      %s92 = scalar_select %p89, %s90, %s91
      %p95 = pneg %p89
      %p96 = scmp.eq.s32.totalorder %s16, 1
      %p97 = por %p95, %p96
      %p98 = scmp.ne.s32.totalorder %s90, %s93
      %p99 = scmp.eq.s32.totalorder %s16, 0
      %p100 = por %p98, %p99
      %p101 = scmp.ne.s32.totalorder %s90, %s93
      %p102 = scmp.eq.s32.totalorder %s21, 1
      %p103 = por %p101, %p102
      %p104 = scmp.ne.s32.totalorder %s93, %s94
      %p105 = scmp.eq.s32.totalorder %s21, 0
      %p106 = por %p104, %p105
      %p107 = scmp.ne.s32.totalorder %s93, %s94
      %p108 = scmp.eq.s32.totalorder %s22, 1
      %p109 = por %p107, %p108
      %p111 = scmp.ne.s32.totalorder %s94, %s110
      %p112 = scmp.eq.s32.totalorder %s22, 0
      %p113 = por %p111, %p112
      %s114 = ssub.s32 %s23, %s35
      %s115 = ssub.s32 %s24, %s31
      %s116 = sor.u32 %s114, %s115
      %p117 = scmp.eq.s32.totalorder %s116, 0
      %s119 = sadd.s32 %s118, 1
      %s120 = scalar_select %p117, %s118, %s119
      %p123 = pneg %p117
      %p124 = scmp.eq.s32.totalorder %s16, 1
      %p125 = por %p123, %p124
      %p126 = scmp.ne.s32.totalorder %s118, %s121
      %p127 = scmp.eq.s32.totalorder %s16, 0
      %p128 = por %p126, %p127
      %p129 = scmp.ne.s32.totalorder %s118, %s121
      %p130 = scmp.eq.s32.totalorder %s21, 1
      %p131 = por %p129, %p130
      %p132 = scmp.ne.s32.totalorder %s121, %s122
      %p133 = scmp.eq.s32.totalorder %s21, 0
      %p134 = por %p132, %p133
      %p135 = scmp.ne.s32.totalorder %s121, %s122
      %p136 = scmp.eq.s32.totalorder %s22, 1
      %p137 = por %p135, %p136
      %p139 = scmp.ne.s32.totalorder %s122, %s138
      %p140 = scmp.eq.s32.totalorder %s22, 0
      %p141 = por %p139, %p140
      %p142 = scmp.le.s32.totalorder 1, %s16
      %p143 = scmp.lt.s32.totalorder %s16, 3
      %p144 = pnand %p142, %p143
      %p145 = pneg %p144
      // Predicated region
      $region9: #{tpu_custom_call.1} parent=5 // pred_check
        _
      $region10: #{tpu_custom_call.1} parent=5 // pred_check_branch
        %147 = sbr.rel (%p144) target = $region12
      $region11: #{tpu_custom_call.1} parent=5 // pred_region
        %s148 = ssub.s32 %s16, 1
        // Predicated region
        $region13: #{tpu_custom_call.1} parent=11 // pred_check
          %p149 = pneg %p80
        $region14: #{tpu_custom_call.1} parent=11 // pred_check_branch
          %151 = sbr.rel (%p149) target = $region16
        $region15: #{tpu_custom_call.1} parent=11 // pred_region
          %s153 = ssub.s32 256, 256
          %154 = vsyncadd [#allocation6], %s153
          %s155 = smul.addr %s26, 64
          %s156 = scalar_lea.hbm %s1, %s155
          %s157 = sshll.u32 [#allocation5], 4
          %s158 = int_to_ptr.vmem [resolvable:$true] %s157
          %163 = dma.hbm_to_vmem [thread:$0]  %s156, 256, %s158, [#allocation6], 64, 64, 4
        $region16: #{tpu_custom_call.1} parent=11 // pred_fallthru
          _
        // Predicated region
        $region17: #{tpu_custom_call.1} parent=11 // pred_check
          %p164 = pneg %p106
        $region18: #{tpu_custom_call.1} parent=11 // pred_check_branch
          %166 = sbr.rel (%p164) target = $region20
        $region19: #{tpu_custom_call.1} parent=11 // pred_region
          %p167 = scmp.lt.s32.totalorder %s26, 0
          %s168 = scalar_select %p167, %s26, 0
          %s169 = scalar_lea.vmem %s2, %s168
        $region20: #{tpu_custom_call.1} parent=11 // pred_fallthru
          _
      $region12: #{tpu_custom_call.1} parent=5 // pred_fallthru
        _
      %p170 = scmp.lt.s32.totalorder %s16, 2
      // Predicated region
      $region21: #{tpu_custom_call.1} parent=5 // pred_check
        %p171 = pneg %p170
      $region22: #{tpu_custom_call.1} parent=5 // pred_check_branch
        %173 = sbr.rel (%p171) target = $region24
      $region23: #{tpu_custom_call.1} parent=5 // pred_region
        // Predicated region
        $region25: #{tpu_custom_call.1} parent=23 // pred_check
          %p174 = pneg %p48
        $region26: #{tpu_custom_call.1} parent=23 // pred_check_branch
          %176 = sbr.rel (%p174) target = $region28
        $region27: #{tpu_custom_call.1} parent=23 // pred_region
          %s177 = sand.u32 %s38, 1
          %s178 = scalar_lea.sflag [#allocation3], %s177
          %s179 = sand.u32 %s38, 1
          %s180 = smul.addr %s179, 4
          %s181 = scalar_lea.vmem [#allocation2], %s180
          %s183 = ssub.s32 64, 64
          %184 = vsyncadd %s178, %s183
          %s185 = smul.addr %s23, 64
          %s186 = scalar_lea.hbm %s0, %s185
          %s188 = sshll.u32 %s181, 4
          %s189 = int_to_ptr.vmem [resolvable:$true] %s188
          %191 = dma.hbm_to_vmem [thread:$0]  %s186, 64, %s189, %s178
        $region28: #{tpu_custom_call.1} parent=23 // pred_fallthru
          _
      $region24: #{tpu_custom_call.1} parent=5 // pred_fallthru
        _
      %p192 = scmp.le.s32.totalorder 1, %s16
      %p193 = scmp.lt.s32.totalorder %s16, 3
      %p194 = pnand %p192, %p193
      %p195 = pneg %p194
      // Predicated region
      $region29: #{tpu_custom_call.1} parent=5 // pred_check
        _
      $region30: #{tpu_custom_call.1} parent=5 // pred_check_branch
        %197 = sbr.rel (%p194) target = $region32
      $region31: #{tpu_custom_call.1} parent=5 // pred_region
        %s198 = ssub.s32 %s16, 1
        %s199 = sand.u32 %s41, 1
        %s200 = scalar_lea.sflag [#allocation3], %s199
        %s201 = sand.u32 %s41, 1
        %s202 = smul.addr %s201, 4
        %s203 = scalar_lea.vmem [#allocation2], %s202
        // Predicated region
        $region33: #{tpu_custom_call.1} parent=31 // pred_check
          %p204 = pneg %p54
        $region34: #{tpu_custom_call.1} parent=31 // pred_check_branch
          %206 = sbr.rel (%p204) target = $region36
        $region35: #{tpu_custom_call.1} parent=31 // pred_region
          %207 = dma.done %s200, 64
        $region36: #{tpu_custom_call.1} parent=31 // pred_fallthru
          _
        // Predicated region
        $region37: #{tpu_custom_call.1} parent=31 // pred_check
          %p208 = pneg %p80
        $region38: #{tpu_custom_call.1} parent=31 // pred_check_branch
          %210 = sbr.rel (%p208) target = $region40
        $region39: #{tpu_custom_call.1} parent=31 // pred_region
          %211 = dma.done [#allocation6], 256
        $region40: #{tpu_custom_call.1} parent=31 // pred_fallthru
          _
        %s212 = sand.u32 %s41, 1
        %s213 = scalar_lea.sflag [#allocation3], %s212
        %s214 = sand.u32 %s41, 1
        %s215 = smul.addr %s214, 4
        %s216 = scalar_lea.vmem [#allocation2], %s215
        %p217 = pneg %p54
        %p218 = pneg %p51
        %p219 = pneg %p80
        %p220 = pneg %p77
        %p221 = scmp.lt.s32.totalorder %s26, 0
        %s222 = scalar_select %p221, %s26, 0
        %s223 = scalar_lea.vmem %s2, %s222
        %p224 = pneg %p106
        %p225 = pneg %p103
        %p226 = pneg %p134
        %p227 = pneg %p131
        %s228 = sand.u32 %s121, 1
        %s229 = scalar_lea.sflag [#allocation4], %s228
        %s230 = sand.u32 %s121, 1
        %s231 = smul.addr %s230, 4
        %s232 = scalar_lea.vmem [#allocation7], %s231
        %p233 = scmp.lt.s32.totalorder %s26, 0
        %s234 = scalar_select %p233, %s26, 0
        %s235 = scalar_lea.vmem %s2, %s234
        %v237 = vld [vmem:[%s203] sm:$0xf]
        %v238 = vld [vmem:[#allocation5] sm:$0xf]
        %v239 = vld [vmem:[#allocation5 + $0x4] sm:$0xf]
        %v240 = vld [vmem:[#allocation5 + $0x8] sm:$0xf]
        %v241 = vld [vmem:[#allocation5 + $0xc] sm:$0xf]
        %v242 = vld [vmem:[%s235] sm:$0x1]
        %v244 = vlaneseq
        %v245 = vshrl.u32 %v244, 7
        %v246 = vsub.s32 0, %v245
        %v247 = vrot.slane %v242, %v246
        %v253 = vunpack.c.l.b16 %v238
        %v254 = vunpack.c.l.b16 %v239
        %v255 = vunpack.c.l.b16 %v240
        %v256 = vunpack.c.l.b16 %v241
        %v257 = vpack.c.b16 %v254, %v253
        %v258 = vpack.c.b16 %v256, %v255
        %vm261 = vcmask 261120
        %v263 = vsel %vm261, %v237, 0
        %265 = vmatprep.subr.bf16.mxu0 0
        %266 = vmatpush1.bf16.msra.mxu0 %v257
        %267 = vmatprep.subr.bf16.mxu0 0
        %268 = vmatpush1.bf16.msra.mxu0 %v258
        %269 = vmatprep.subr.bf16.mxu0 0
        %270 = vmatpush1.bf16.msra.mxu0 0
        %271 = vmatprep.subr.bf16.mxu0 0
        %272 = vmatpush1.bf16.msra.mxu0 0
        %273 = vmatprep.subr.bf16.mxu0 0
        %274 = vmatpush1.bf16.msra.mxu0 0
        %275 = vmatprep.subr.bf16.mxu0 0
        %276 = vmatpush1.bf16.msra.mxu0 0
        %277 = vmatprep.subr.bf16.mxu0 0
        %278 = vmatpush1.bf16.msra.mxu0 0
        %279 = vmatprep.subr.bf16.mxu0 0
        %280 = vmatpush1.bf16.msra.mxu0 0
        %281 = vmatprep.subr.bf16.mxu0 0
        %282 = vmatpush1.bf16.msra.mxu0 0
        %283 = vmatprep.subr.bf16.mxu0 0
        %284 = vmatpush1.bf16.msra.mxu0 0
        %285 = vmatprep.subr.bf16.mxu0 0
        %286 = vmatpush1.bf16.msra.mxu0 0
        %287 = vmatprep.subr.bf16.mxu0 0
        %288 = vmatpush1.bf16.msra.mxu0 0
        %289 = vmatprep.subr.bf16.mxu0 0
        %290 = vmatpush1.bf16.msra.mxu0 0
        %291 = vmatprep.subr.bf16.mxu0 0
        %292 = vmatpush1.bf16.msra.mxu0 0
        %293 = vmatprep.subr.bf16.mxu0 0
        %294 = vmatpush1.bf16.msra.mxu0 0
        %295 = vmatprep.subr.bf16.mxu0 0
        %296 = vmatpush1.bf16.msra.mxu0 0
        %297 = vmatprep.mubr.bf16.mxu0 0
        %298 = vmatmul.mubr.bf16.gmra.mrb[0].mxu0 %v263
        %v299 = vpop.f32.mrb[0].mxu0
        %v300 = vadd.f32 %v247, %v299
        %v301 = vpop.f32.mrb[0].mxu0
        %v302 = vpop.f32.mrb[0].mxu0
        %v303 = vpop.f32.mrb[0].mxu0
        %304 = vdwg.mxu0
        %v305 = vpack.c.bf16 %v300, %v300
        %vm306 = vcmask 781312
        %307 = vst.msk [vmem:[%s232] sm:$0xf] %vm306, %v305
        %s308 = sand.u32 %s121, 1
        %s309 = scalar_lea.sflag [#allocation4], %s308
        %s310 = sand.u32 %s121, 1
        %s311 = smul.addr %s310, 4
        %s312 = scalar_lea.vmem [#allocation7], %s311
        // Predicated region
        $region41: #{tpu_custom_call.1} parent=31 // pred_check
          %p313 = pneg %p131
        $region42: #{tpu_custom_call.1} parent=31 // pred_check_branch
          %315 = sbr.rel (%p313) target = $region44
        $region43: #{tpu_custom_call.1} parent=31 // pred_region
          %s317 = ssub.s32 64, 64
          %318 = vsyncadd %s309, %s317
          %s319 = sadd.s32 %s26, %s25
          %s320 = smul.addr %s319, 64
          %s321 = scalar_lea.hbm %s3, %s320
          %s323 = sshll.u32 %s312, 4
          %s324 = int_to_ptr.vmem [resolvable:$true] %s323
          %326 = dma.vmem_to_hbm [thread:$0]  %s324, 64, %s321, %s309
        $region44: #{tpu_custom_call.1} parent=31 // pred_fallthru
          _
      $region32: #{tpu_custom_call.1} parent=5 // pred_fallthru
        _
      %p327 = scmp.le.s32.totalorder 2, %s16
      // Predicated region
      $region45: #{tpu_custom_call.1} parent=5 // pred_check
        %p328 = pneg %p327
      $region46: #{tpu_custom_call.1} parent=5 // pred_check_branch
        %330 = sbr.rel (%p328) target = $region48
      $region47: #{tpu_custom_call.1} parent=5 // pred_region
        %s331 = ssub.s32 %s16, 2
        // Predicated region
        $region49: #{tpu_custom_call.1} parent=47 // pred_check
          %p332 = pneg %p137
        $region50: #{tpu_custom_call.1} parent=47 // pred_check_branch
          %334 = sbr.rel (%p332) target = $region52
        $region51: #{tpu_custom_call.1} parent=47 // pred_region
          %s335 = sand.u32 %s122, 1
          %s336 = scalar_lea.sflag [#allocation4], %s335
          %s337 = sand.u32 %s122, 1
          %s338 = smul.addr %s337, 4
          %s339 = scalar_lea.vmem [#allocation7], %s338
          %340 = dma.done %s336, 64
        $region52: #{tpu_custom_call.1} parent=47 // pred_fallthru
          _
      $region48: #{tpu_custom_call.1} parent=5 // pred_fallthru
        _
    $region6: #{tpu_custom_call.1} parent=1 // loop_footer
      %s20 = sadd.s32 1, %s16
    $region7: #{tpu_custom_call.1} parent=1 // loop_footer_branch
      %15 = sbr.rel target = $region3
    $region8: #{tpu_custom_call.1} parent=1 // loop_exit
      _
    %341 = vsyncpa [#allocation3], 1
    %s342 = scalar_lea.sflag [#allocation3], 1
    %343 = vsyncpa %s342, 1
    %344 = vsyncpa [#allocation6], 1
    %345 = vsyncpa [#allocation4], 1
    %s346 = scalar_lea.sflag [#allocation4], 1
    %347 = vsyncpa %s346, 1

</llo_original>
